<compile_context>
chip_gen: v7x
topology: tpu7x:2x2x1
jax: 0.10.0
libtpu: 0.0.40
codegen_flags: <defaults>
</compile_context>

<pallas_src>
import functools
import math

import jax
import jax.numpy as jnp
from jax.experimental import pallas as pl
from jax.experimental.pallas import tpu as pltpu


_VMEM_BUDGET = 24 * 1024 * 1024   # conservative working-set budget (bytes)


def _round_up(x, m):
    return ((x + m - 1) // m) * m


def _pad2d(a, rows, cols):
    pr, pc = rows - a.shape[0], cols - a.shape[1]
    if pr == 0 and pc == 0:
        return a                   # skip the extra HBM round-trip when unneeded
    return jnp.pad(a, ((0, pr), (0, pc)))


def _pick_tile_b(b_aligned, cap=1024):
    """Batch tile: multiple of 8, <= cap.  Prefer a divisor of the aligned
    batch (no batch over-padding) that still yields >= 2 grid steps so v7x can
    shard the parallel batch axis across both TensorCores."""
    cap = min(cap, b_aligned)
    for t in range(cap, max(cap // 8, 7), -8):
        if b_aligned % t == 0 and (b_aligned // t >= 2 or b_aligned <= 8):
            return t
    # No suitable divisor: accept a little padding; still aim for >= 2 steps.
    if b_aligned > 8 and b_aligned // cap < 2:
        return _round_up(pl.cdiv(b_aligned, 2), 8)
    return cap


def _mapping_block_kernel(x_ref, w_ref, b_ref, o_ref, *, std):
    # Single-K variant: x (tile_b, n_in_p) @ w (n_in_p, n_out_p) on the MXU
    # with f32 accumulation; equalized-LR scale + pre-scaled bias +
    # leaky_relu(0.2) in the f32 epilogue.
    y = jnp.dot(x_ref[...], w_ref[...], preferred_element_type=jnp.float32)
    y = y * std + b_ref[...]
    y = jnp.maximum(y, 0.2 * y)           # leaky_relu(y, 0.2), exact
    o_ref[...] = y.astype(o_ref.dtype)


def _mapping_block_kernel_ktiled(x_ref, w_ref, b_ref, o_ref, acc_ref, *, std):
    # K-tiled variant (wide n_in): accumulate partial products in an f32 VMEM
    # scratch; apply the epilogue only on the last K step.
    k = pl.program_id(1)

    @pl.when(k == 0)
    def _():
        acc_ref[...] = jnp.zeros_like(acc_ref)

    acc_ref[...] += jnp.dot(x_ref[...], w_ref[...],
                            preferred_element_type=jnp.float32)

    @pl.when(k == pl.num_programs(1) - 1)
    def _():
        y = acc_ref[...] * std + b_ref[...]
        y = jnp.maximum(y, 0.2 * y)
        o_ref[...] = y.astype(o_ref.dtype)


def mapping_block(x, weight, bias, *, lrmul, gain=math.sqrt(2.0),
                  compute_dtype=jnp.bfloat16):
    """Forward of ALAE MappingBlock: leaky_relu(lreq.Linear(x), 0.2).

    x: (B, n_in); weight: (n_out, n_in) raw (unscaled) parameter; bias: (n_out,).
    """
    B, n_in = x.shape
    n_out, n_in_w = weight.shape
    assert n_in == n_in_w
    std = float(gain) / math.sqrt(n_in) * float(lrmul)
    out_dtype = x.dtype

    # ---- lane/sublane-dense padded shapes ---------------------------------
    n_in_p = _round_up(n_in, 128)
    n_out_p = _round_up(n_out, 128)
    b_aligned = _round_up(B, 8)
    tile_b = _pick_tile_b(b_aligned)

    in_isz = jnp.dtype(compute_dtype).itemsize
    out_isz = jnp.dtype(out_dtype).itemsize

    # ---- VMEM working-set budgeting (v7x 64 MiB phys / v5e 16 MiB scoped) --
    def footprint(tb, tk):
        ktiled = tk < n_in_p
        f = (2 * tb * tk * in_isz            # x tiles (double-buffered)
             + 2 * n_out_p * tk * in_isz     # resident weight (2 pipeline bufs)
             + 2 * tb * n_out_p * out_isz    # output tiles (double-buffered)
             + 2 * n_out_p * 4)              # bias
        if ktiled:
            f += tb * n_out_p * 4            # f32 accumulator scratch
        return f

    tile_k = n_in_p
    while footprint(tile_b, tile_k) > _VMEM_BUDGET and tile_k > 512:
        tile_k = max(512, _round_up(tile_k // 2, 128))
    while footprint(tile_b, tile_k) > _VMEM_BUDGET and tile_b > 64:
        tile_b = max(64, _round_up(tile_b // 2, 8))

    n_in_pp = _round_up(n_in_p, tile_k)
    B_p = _round_up(b_aligned, tile_b)
    nb, nk = B_p // tile_b, n_in_pp // tile_k

    # ---- one-time wrapper prep (amortized over the whole grid) ------------
    # x/weight stored & fed as bf16; weight pre-transposed to (n_in, n_out) so
    # the kernel is a plain NN contraction (no in-kernel transpose).
    x_p = _pad2d(x.astype(compute_dtype), B_p, n_in_pp)
    w_p = _pad2d(weight.astype(compute_dtype).T, n_in_pp, n_out_p)
    # Bias pre-scaled by lrmul and kept in f32 for the epilogue.
    b_p = _pad2d((bias.astype(jnp.float32) * float(lrmul)).reshape(1, n_out),
                 1, n_out_p)

    cost = pl.CostEstimate(
        flops=2 * B_p * n_in_pp * n_out_p,
        transcendentals=0,
        bytes_accessed=(B_p * n_in_pp * in_isz + n_in_pp * n_out_p * in_isz
                        + n_out_p * 4 + B_p * n_out_p * out_isz),
    )
    compiler_params = pltpu.CompilerParams(
        dimension_semantics=(("parallel",) if nk == 1
                             else ("parallel", "arbitrary")),
        vmem_limit_bytes=max(32 * 1024 * 1024,
                             footprint(tile_b, tile_k) + 2 * 1024 * 1024),
    )

    if nk == 1:
        grid_spec = pltpu.PrefetchScalarGridSpec(
            num_scalar_prefetch=0,
            grid=(nb,),
            in_specs=[
                pl.BlockSpec((tile_b, n_in_pp), lambda i: (i, 0)),
                # Weight / bias: constant block index -> stay resident in VMEM.
                pl.BlockSpec((n_in_pp, n_out_p), lambda i: (0, 0)),
                pl.BlockSpec((1, n_out_p), lambda i: (0, 0)),
            ],
            out_specs=pl.BlockSpec((tile_b, n_out_p), lambda i: (i, 0)),
        )
        kernel = functools.partial(_mapping_block_kernel, std=std)
    else:
        grid_spec = pltpu.PrefetchScalarGridSpec(
            num_scalar_prefetch=0,
            grid=(nb, nk),
            in_specs=[
                pl.BlockSpec((tile_b, tile_k), lambda i, k: (i, k)),
                pl.BlockSpec((tile_k, n_out_p), lambda i, k: (k, 0)),
                pl.BlockSpec((1, n_out_p), lambda i, k: (0, 0)),
            ],
            out_specs=pl.BlockSpec((tile_b, n_out_p), lambda i, k: (i, 0)),
            scratch_shapes=[pltpu.VMEM((tile_b, n_out_p), jnp.float32)],
        )
        kernel = functools.partial(_mapping_block_kernel_ktiled, std=std)

    out_p = pl.pallas_call(
        kernel,
        out_shape=jax.ShapeDtypeStruct((B_p, n_out_p), out_dtype),
        grid_spec=grid_spec,
        compiler_params=compiler_params,
        cost_estimate=cost,
    )(x_p, w_p, b_p)

    if B_p != B or n_out_p != n_out:
        out_p = out_p[:B, :n_out]
    return out_p


def mapping_block_ref(x, weight, bias, *, lrmul, gain=math.sqrt(2.0)):
    """Pure-JAX f32 reference mirroring the PyTorch forward."""
    n_in = x.shape[-1]
    std = float(gain) / math.sqrt(n_in) * float(lrmul)
    y = x @ (weight * std).T + bias * float(lrmul)
    return jnp.where(y >= 0, y, 0.2 * y)


if __name__ == "__main__":
    # Small, module-consistent shapes: the latent mapping acts on (batch, feat).
    B, N_IN, N_OUT = 8, 32, 32
    LRMUL = 0.1

    key = jax.random.PRNGKey(0)
    kx, kw = jax.random.split(key)

    x = jax.random.normal(kx, (B, N_IN), dtype=jnp.float32)
    # lreq init: normal_(weight, mean=0, std=1/lrmul); bias zeroed.
    weight = jax.random.normal(kw, (N_OUT, N_IN), dtype=jnp.float32) * (1.0 / LRMUL)
    bias = jnp.zeros((N_OUT,), dtype=jnp.float32)

    out = mapping_block(x, weight, bias, lrmul=LRMUL)
    out = jax.block_until_ready(out)
    assert out.shape == (B, N_OUT)

    # Reference evaluated on the same bf16-rounded x / weight the kernel
    # consumes (isolates the intended bf16 storage rounding from kernel bugs).
    x_bf = x.astype(jnp.bfloat16).astype(jnp.float32)
    w_bf = weight.astype(jnp.bfloat16).astype(jnp.float32)
    ref = mapping_block_ref(x_bf, w_bf, bias, lrmul=LRMUL)
    assert jnp.allclose(out, ref, atol=1e-3, rtol=1e-3), "mismatch vs reference"

    print("KERNEL_OK")
</pallas_src>

<mosaic_0001>
module attributes {stable_mosaic.version = 11 : i64} {
  func.func @_mapping_block_kernel(%arg0: i32, %arg1: memref<8x128xbf16, #tpu.memory_space<vmem>>, %arg2: memref<128x128xbf16, #tpu.memory_space<vmem>>, %arg3: memref<1x128xf32, #tpu.memory_space<vmem>>, %arg4: memref<8x128xf32, #tpu.memory_space<vmem>>) attributes {dimension_semantics = [#tpu.dimension_semantics<parallel>], iteration_bounds = array<i64: 1>, scalar_prefetch = 0 : i64, scratch_operands = 0 : i64, tpu.core_type = #tpu.core_type<tc>, window_params = [{transform_indices = @transform_0, window_bounds = array<i64: 8, 128>}, {pipeline_mode = #tpu.pipeline_mode<synchronous>, transform_indices = @transform_1, window_bounds = array<i64: 128, 128>}, {pipeline_mode = #tpu.pipeline_mode<synchronous>, transform_indices = @transform_2, window_bounds = array<i64: 1, 128>}, {transform_indices = @transform_3, window_bounds = array<i64: 8, 128>}]} {
    %c0 = arith.constant 0 : index
    %c0_0 = arith.constant 0 : index
    %0 = vector.load %arg1[%c0, %c0_0] : memref<8x128xbf16, #tpu.memory_space<vmem>>, vector<8x128xbf16>
    %c0_1 = arith.constant 0 : index
    %c0_2 = arith.constant 0 : index
    %1 = vector.load %arg2[%c0_1, %c0_2] : memref<128x128xbf16, #tpu.memory_space<vmem>>, vector<128x128xbf16>
    %cst = arith.constant dense<0.000000e+00> : vector<8x128xf32>
    %2 = tpu.matmul %0, %1, %cst {dimension_numbers = #tpu.dot_dimension_numbers<[1], [0], [0], [1], [0, 0, 1, 1], [], []>} : vector<8x128xbf16>, vector<128x128xbf16>, vector<8x128xf32> -> vector<8x128xf32>
    %cst_3 = arith.constant 2.500000e-02 : f32
    %3 = vector.broadcast %cst_3 : f32 to vector<8x128xf32>
    %4 = arith.mulf %2, %3 : vector<8x128xf32>
    %c0_4 = arith.constant 0 : index
    %c0_5 = arith.constant 0 : index
    %5 = vector.load %arg3[%c0_4, %c0_5] : memref<1x128xf32, #tpu.memory_space<vmem>>, vector<1x128xf32>
    %6 = vector.broadcast %5 : vector<1x128xf32> to vector<8x128xf32>
    %7 = arith.addf %4, %6 : vector<8x128xf32>
    %cst_6 = arith.constant 2.000000e-01 : f32
    %8 = vector.broadcast %cst_6 : f32 to vector<8x128xf32>
    %9 = arith.mulf %8, %7 : vector<8x128xf32>
    %10 = arith.maximumf %7, %9 : vector<8x128xf32>
    %c0_7 = arith.constant 0 : index
    %c0_8 = arith.constant 0 : index
    %11 = vector.load %arg4[%c0_7, %c0_8] : memref<8x128xf32, #tpu.memory_space<vmem>>, vector<8x128xf32>
    tpu.vector_store %arg4[%c0_7, %c0_8], %10 {strides = array<i32>} : memref<8x128xf32, #tpu.memory_space<vmem>>, vector<8x128xf32>,
    return
  }
  func.func @transform_0(%arg0: i32) -> (i32, i32) {
    %c0_i32 = arith.constant 0 : i32
    %c0_i32_0 = arith.constant 0 : i32
    return %arg0, %c0_i32 : i32, i32
  }
  func.func @transform_1(%arg0: i32) -> (i32, i32) {
    %c0_i32 = arith.constant 0 : i32
    %c0_i32_0 = arith.constant 0 : i32
    %c0_i32_1 = arith.constant 0 : i32
    return %c0_i32, %c0_i32_0 : i32, i32
  }
  func.func @transform_2(%arg0: i32) -> (i32, i32) {
    %c0_i32 = arith.constant 0 : i32
    %c0_i32_0 = arith.constant 0 : i32
    %c0_i32_1 = arith.constant 0 : i32
    return %c0_i32, %c0_i32_0 : i32, i32
  }
  func.func @transform_3(%arg0: i32) -> (i32, i32) {
    %c0_i32 = arith.constant 0 : i32
    %c0_i32_0 = arith.constant 0 : i32
    return %arg0, %c0_i32 : i32, i32
  }
}

</mosaic_0001>

<llo_original>
// kernel: tpu_custom_call.1
$region0: #{tpu_custom_call.1}
  #allocation0 [shape = 'u32[]', space=smem, size = 0x4, offset = 0x4, fixed_abs, tag = 'smem constant byte address 0x4 - core index']
  #allocation1 [shape = 'u32[144,128]{1,0:T(1,128)}', space=vmem, size = 0x12000, scoped, tag = 'internal scratch']
  %s0 = inlined_call_operand.hbm [shape: bf16[8,128], index: 0, kind: input, shape index: {}]
  %s1 = inlined_call_operand.hbm [shape: bf16[128,128], index: 1, kind: input, shape index: {}]
  %s2 = inlined_call_operand.vmem [shape: f32[1,128], index: 2, kind: input, shape index: {}]
  %s3 = inlined_call_operand.hbm [shape: f32[8,128], index: 3, kind: output, shape index: {}]
  %s4 = sld [smem:[#allocation0]]
  $region30: #{tpu_custom_call.1} parent=0
    _
  %s6 = ssub.s32 1, %s4
  %s7 = scalar_select 0, %s6, %s4
  $region1: #{tpu_custom_call.1} parent=0
    #allocation2 [shape = 'u8[2048]{0}', space=vmem, size = 0x800, scoped, tag = 'input window, operand 0, single buffered']
    #allocation3 [shape = 's32[1]{0}', space=sflag, size = 0x4, scoped, tag = 'scoped memory for tpu_custom_call.1']
    #allocation4 [shape = 's32[1]{0}', space=sflag, size = 0x4, scoped, tag = 'scoped memory for tpu_custom_call.1']
    #allocation5 [shape = 'u8[32768]{0}', space=vmem, size = 0x8000, scoped, tag = 'input window, operand 1, single buffered']
    #allocation6 [shape = 's32[1]{0}', space=sflag, size = 0x4, scoped, tag = 'scoped memory for tpu_custom_call.1']
    #allocation7 [shape = 'u8[4096]{0}', space=vmem, size = 0x1000, scoped, tag = 'output window, operand 0, single buffered']
    %8 = vsyncpa [#allocation3], 0
    %9 = vsyncpa [#allocation6], 0
    %10 = vsyncpa [#allocation4], 0
    // Predicated region
    $region2: #{tpu_custom_call.1} parent=1 // pred_check
      _
    $region3: #{tpu_custom_call.1} parent=1 // pred_check_branch
      %12 = sbr.rel (0) target = $region5
    $region4: #{tpu_custom_call.1} parent=1 // pred_region
      %s14 = ssub.s32 64, 64
      %15 = vsyncadd [#allocation3], %s14
      %s17 = sshll.u32 [#allocation2], 4
      %s18 = int_to_ptr.vmem [resolvable:$true] %s17
      %20 = dma.hbm_to_vmem [thread:$0]  %s0, 64, %s18, [#allocation3]
    $region5: #{tpu_custom_call.1} parent=1 // pred_fallthru
      _
    // Predicated region
    $region6: #{tpu_custom_call.1} parent=1 // pred_check
      _
    $region7: #{tpu_custom_call.1} parent=1 // pred_check_branch
      %22 = sbr.rel (0) target = $region9
    $region8: #{tpu_custom_call.1} parent=1 // pred_region
      %s24 = ssub.s32 1024, 1024
      %25 = vsyncadd [#allocation6], %s24
      %s26 = sshll.u32 [#allocation5], 4
      %s27 = int_to_ptr.vmem [resolvable:$true] %s26
      %32 = dma.hbm_to_vmem [thread:$0]  %s1, 1024, %s27, [#allocation6], 64, 64, 4
    $region9: #{tpu_custom_call.1} parent=1 // pred_fallthru
      _
    // Predicated region
    $region10: #{tpu_custom_call.1} parent=1 // pred_check
      _
    $region11: #{tpu_custom_call.1} parent=1 // pred_check_branch
      %34 = sbr.rel (0) target = $region13
    $region12: #{tpu_custom_call.1} parent=1 // pred_region
      _
    $region13: #{tpu_custom_call.1} parent=1 // pred_fallthru
      _
    // Predicated region
    $region14: #{tpu_custom_call.1} parent=1 // pred_check
      _
    $region15: #{tpu_custom_call.1} parent=1 // pred_check_branch
      %36 = sbr.rel (0) target = $region17
    $region16: #{tpu_custom_call.1} parent=1 // pred_region
      %37 = dma.done [#allocation3], 64
    $region17: #{tpu_custom_call.1} parent=1 // pred_fallthru
      _
    // Predicated region
    $region18: #{tpu_custom_call.1} parent=1 // pred_check
      _
    $region19: #{tpu_custom_call.1} parent=1 // pred_check_branch
      %39 = sbr.rel (0) target = $region21
    $region20: #{tpu_custom_call.1} parent=1 // pred_region
      %40 = dma.done [#allocation6], 1024
    $region21: #{tpu_custom_call.1} parent=1 // pred_fallthru
      _
    %v42 = vld [vmem:[#allocation2] sm:$0xf]
    %v43 = vld [vmem:[#allocation5] sm:$0xf]
    %v44 = vld [vmem:[#allocation5 + $0x4] sm:$0xf]
    %v45 = vld [vmem:[#allocation5 + $0x8] sm:$0xf]
    %v46 = vld [vmem:[#allocation5 + $0xc] sm:$0xf]
    %v47 = vld [vmem:[#allocation5 + $0x10] sm:$0xf]
    %v48 = vld [vmem:[#allocation5 + $0x14] sm:$0xf]
    %v49 = vld [vmem:[#allocation5 + $0x18] sm:$0xf]
    %v50 = vld [vmem:[#allocation5 + $0x1c] sm:$0xf]
    %v51 = vld [vmem:[#allocation5 + $0x20] sm:$0xf]
    %v52 = vld [vmem:[#allocation5 + $0x24] sm:$0xf]
    %v53 = vld [vmem:[#allocation5 + $0x28] sm:$0xf]
    %v54 = vld [vmem:[#allocation5 + $0x2c] sm:$0xf]
    %v55 = vld [vmem:[#allocation5 + $0x30] sm:$0xf]
    %v56 = vld [vmem:[#allocation5 + $0x34] sm:$0xf]
    %v57 = vld [vmem:[#allocation5 + $0x38] sm:$0xf]
    %v58 = vld [vmem:[#allocation5 + $0x3c] sm:$0xf]
    %v75 = vunpack.c.l.b16 %v43
    %v76 = vunpack.c.l.b16 %v44
    %v77 = vunpack.c.l.b16 %v45
    %v78 = vunpack.c.l.b16 %v46
    %v79 = vunpack.c.l.b16 %v47
    %v80 = vunpack.c.l.b16 %v48
    %v81 = vunpack.c.l.b16 %v49
    %v82 = vunpack.c.l.b16 %v50
    %v83 = vunpack.c.l.b16 %v51
    %v84 = vunpack.c.l.b16 %v52
    %v85 = vunpack.c.l.b16 %v53
    %v86 = vunpack.c.l.b16 %v54
    %v87 = vunpack.c.l.b16 %v55
    %v88 = vunpack.c.l.b16 %v56
    %v89 = vunpack.c.l.b16 %v57
    %v90 = vunpack.c.l.b16 %v58
    %v91 = vpack.c.b16 %v76, %v75
    %v92 = vpack.c.b16 %v78, %v77
    %v93 = vpack.c.b16 %v80, %v79
    %v94 = vpack.c.b16 %v82, %v81
    %v95 = vpack.c.b16 %v84, %v83
    %v96 = vpack.c.b16 %v86, %v85
    %v97 = vpack.c.b16 %v88, %v87
    %v98 = vpack.c.b16 %v90, %v89
    %107 = vmatprep.subr.bf16.mxu0 0
    %108 = vmatpush1.bf16.msra.mxu0 %v91
    %109 = vmatprep.subr.bf16.mxu0 0
    %110 = vmatpush1.bf16.msra.mxu0 %v92
    %111 = vmatprep.subr.bf16.mxu0 0
    %112 = vmatpush1.bf16.msra.mxu0 %v93
    %113 = vmatprep.subr.bf16.mxu0 0
    %114 = vmatpush1.bf16.msra.mxu0 %v94
    %115 = vmatprep.subr.bf16.mxu0 0
    %116 = vmatpush1.bf16.msra.mxu0 %v95
    %117 = vmatprep.subr.bf16.mxu0 0
    %118 = vmatpush1.bf16.msra.mxu0 %v96
    %119 = vmatprep.subr.bf16.mxu0 0
    %120 = vmatpush1.bf16.msra.mxu0 %v97
    %121 = vmatprep.subr.bf16.mxu0 0
    %122 = vmatpush1.bf16.msra.mxu0 %v98
    %123 = vmatprep.subr.bf16.mxu0 0
    %124 = vmatpush1.bf16.msra.mxu0 0
    %125 = vmatprep.subr.bf16.mxu0 0
    %126 = vmatpush1.bf16.msra.mxu0 0
    %127 = vmatprep.subr.bf16.mxu0 0
    %128 = vmatpush1.bf16.msra.mxu0 0
    %129 = vmatprep.subr.bf16.mxu0 0
    %130 = vmatpush1.bf16.msra.mxu0 0
    %131 = vmatprep.subr.bf16.mxu0 0
    %132 = vmatpush1.bf16.msra.mxu0 0
    %133 = vmatprep.subr.bf16.mxu0 0
    %134 = vmatpush1.bf16.msra.mxu0 0
    %135 = vmatprep.subr.bf16.mxu0 0
    %136 = vmatpush1.bf16.msra.mxu0 0
    %137 = vmatprep.subr.bf16.mxu0 0
    %138 = vmatpush1.bf16.msra.mxu0 0
    %139 = vmatprep.mubr.bf16.mxu0 0
    %140 = vmatmul.mubr.bf16.gmra.mrb[0].mxu0 %v42
    %v141 = vpop.f32.mrb[0].mxu0
    %v142 = vadd.f32 0.0, %v141
    %v143 = vpop.f32.mrb[0].mxu0
    %v144 = vpop.f32.mrb[0].mxu0
    %v145 = vpop.f32.mrb[0].mxu0
    %146 = vdwg.mxu0
    %v147 = vmul.f32 %v142, 0.025
    %v148 = vld [vmem:[%s2] sm:$0x1]
    %v150 = vlaneseq
    %v151 = vshrl.u32 %v150, 7
    %v152 = vsub.s32 0, %v151
    %v153 = vrot.slane %v148, %v152
    %v155 = vadd.f32 %v147, %v153
    %v156 = vmul.f32 %v155, 0.2
    %v157 = vmax.f32 %v155, %v156
    %158 = vst [vmem:[#allocation7] sm:$0xff] %v157
    // Predicated region
    $region22: #{tpu_custom_call.1} parent=1 // pred_check
      _
    $region23: #{tpu_custom_call.1} parent=1 // pred_check_branch
      %160 = sbr.rel (0) target = $region25
    $region24: #{tpu_custom_call.1} parent=1 // pred_region
      %s162 = ssub.s32 128, 128
      %163 = vsyncadd [#allocation4], %s162
      %s165 = sshll.u32 [#allocation7], 4
      %s166 = int_to_ptr.vmem [resolvable:$true] %s165
      %168 = dma.vmem_to_hbm [thread:$0]  %s166, 128, %s3, [#allocation4]
    $region25: #{tpu_custom_call.1} parent=1 // pred_fallthru
      _
    // Predicated region
    $region26: #{tpu_custom_call.1} parent=1 // pred_check
      _
    $region27: #{tpu_custom_call.1} parent=1 // pred_check_branch
      %170 = sbr.rel (0) target = $region29
    $region28: #{tpu_custom_call.1} parent=1 // pred_region
      %171 = dma.done [#allocation4], 128
    $region29: #{tpu_custom_call.1} parent=1 // pred_fallthru
      _
    %172 = vsyncpa [#allocation3], 1
    %173 = vsyncpa [#allocation6], 1
    %174 = vsyncpa [#allocation4], 1

</llo_original>
